<compile_context>
chip_gen: v5e
topology: v5e:2x2
jax: 0.10.0
libtpu: 0.0.40
codegen_flags: <defaults>
</compile_context>

<pallas_src>
import jax
import jax.numpy as jnp
from jax.experimental import pallas as pl
from jax.experimental.pallas import tpu as pltpu


def _feat_emb_attn_kernel(q_ref, x_ref, z_ref, a_ref):
    # q_ref : (1, D)      query pre-scaled by D^-0.5, f32
    # x_ref : (TB, S, D)  TB batch rows (native input dtype)
    # z_ref : (TB, D)     pooled output
    # a_ref : (TB, S)     softmax attention weights
    x = x_ref[...].astype(jnp.float32)          # (TB, S, D)
    q = q_ref[...]                              # (1, D), already * D^-0.5

    # scores[b, s] = sum_d x[b, s, d] * q[d]   (VPU multiply + lane reduce)
    scores = jnp.sum(x * q, axis=-1)            # (TB, S), f32

    # softmax over the sequence axis (PyTorch Softmax(dim=1))
    m = jnp.max(scores, axis=-1, keepdims=True)
    e = jnp.exp(scores - m)
    denom = jnp.sum(e, axis=-1, keepdims=True)
    attn = e * pl.reciprocal(denom)             # (TB, S)

    a_ref[...] = attn.astype(a_ref.dtype)

    # z[b, d] = sum_s attn[b, s] * x[b, s, d]   (broadcast + sublane reduce)
    z = jnp.sum(attn[:, :, None] * x, axis=1)   # (TB, D), f32
    z_ref[...] = z.astype(z_ref.dtype)


def _choose_block_b(B, S, D, itemsize, target_bytes):
    """Pick TB rows per grid step so one X tile is ~target_bytes (double-buffered)."""
    row_bytes = max(1, S * D * itemsize)
    tb = max(1, target_bytes // row_bytes)
    if tb >= B:
        return B
    # Keep output blocks sublane-friendly (multiple of 8) when tiling B.
    tb = max(min(8, B), (tb // 8) * 8)
    return min(tb, B)


def feature_emb_attention(x, queryv, *, block_b=None,
                          target_block_bytes=6 * 1024 * 1024):
    """x: (B, S, D), queryv: (D,) -> (z (B, D), attn (B, S))."""
    B, S, D = x.shape
    out_dtype = x.dtype

    # Fold both D^-0.25 factors into a single D^-0.5 scale on the query vector.
    q2 = (queryv.astype(jnp.float32) * (float(D) ** -0.5)).reshape(1, D)

    if block_b is None:
        block_b = _choose_block_b(B, S, D, jnp.dtype(x.dtype).itemsize,
                                  target_block_bytes)
    grid_b = pl.cdiv(B, block_b)

    z, attn = pl.pallas_call(
        _feat_emb_attn_kernel,
        out_shape=(
            jax.ShapeDtypeStruct((B, D), out_dtype),
            jax.ShapeDtypeStruct((B, S), out_dtype),
        ),
        grid=(grid_b,),
        in_specs=[
            pl.BlockSpec((1, D), lambda b: (0, 0)),            # query, shared
            pl.BlockSpec((block_b, S, D), lambda b: (b, 0, 0)),  # TB batch rows
        ],
        out_specs=(
            pl.BlockSpec((block_b, D), lambda b: (b, 0)),
            pl.BlockSpec((block_b, S), lambda b: (b, 0)),
        ),
        compiler_params=pltpu.CompilerParams(
            dimension_semantics=("parallel",),
            # 2 x ~6 MiB X buffers + small outputs: safely under v7x's 64 MiB
            # physical VMEM and v5e's 16 MiB default scoped limit is lifted.
            vmem_limit_bytes=48 * 1024 * 1024,
        ),
    )(q2, x)

    return z, attn


def _reference(x, queryv):
    # Pure-JAX mirror of the PyTorch forward, for verification.
    d = x.shape[-1]
    x_scaled = x.astype(jnp.float32) / d ** 0.25
    q_scaled = queryv.astype(jnp.float32) / d ** 0.25
    attn = jnp.einsum("bsd,d->bs", x_scaled, q_scaled)
    attn = jax.nn.softmax(attn, axis=1)
    z = jnp.einsum("bs,bsd->bd", attn, x.astype(jnp.float32))
    return z, attn


if __name__ == "__main__":
    # Small shapes consistent with the module: (bsize, seqlen, feature_dim)
    B, S, D = 2, 8, 32

    key = jax.random.PRNGKey(0)
    kx, kq = jax.random.split(key)
    x = jax.random.normal(kx, (B, S, D), dtype=jnp.float32)
    # Deterministic stand-in for nn.Parameter(torch.randn(input_dim))
    queryv = jax.random.normal(kq, (D,), dtype=jnp.float32)

    z, attn = feature_emb_attention(x, queryv)
    jax.block_until_ready((z, attn))

    z_ref, attn_ref = _reference(x, queryv)
    assert z.shape == (B, D) and attn.shape == (B, S)
    assert jnp.allclose(attn, attn_ref, atol=1e-5, rtol=1e-5)
    assert jnp.allclose(z, z_ref, atol=1e-5, rtol=1e-5)

    print("KERNEL_OK")
</pallas_src>

<mosaic_0001>
module attributes {stable_mosaic.version = 11 : i64} {
  func.func @_feat_emb_attn_kernel(%arg0: i32, %arg1: memref<1x32xf32, #tpu.memory_space<vmem>>, %arg2: memref<2x8x32xf32, #tpu.memory_space<vmem>>, %arg3: memref<2x32xf32, #tpu.memory_space<vmem>>, %arg4: memref<2x8xf32, #tpu.memory_space<vmem>>) attributes {dimension_semantics = [#tpu.dimension_semantics<parallel>], iteration_bounds = array<i64: 1>, scalar_prefetch = 0 : i64, scratch_operands = 0 : i64, tpu.core_type = #tpu.core_type<tc>, window_params = [{pipeline_mode = #tpu.pipeline_mode<synchronous>, transform_indices = @transform_0, window_bounds = array<i64: 1, 32>}, {transform_indices = @transform_1, window_bounds = array<i64: 2, 8, 32>}, {transform_indices = @transform_2, window_bounds = array<i64: 2, 32>}, {transform_indices = @transform_3, window_bounds = array<i64: 2, 8>}]} {
    %c0 = arith.constant 0 : index
    %c0_0 = arith.constant 0 : index
    %c0_1 = arith.constant 0 : index
    %0 = vector.load %arg2[%c0, %c0_0, %c0_1] : memref<2x8x32xf32, #tpu.memory_space<vmem>>, vector<2x8x32xf32>
    %c0_2 = arith.constant 0 : index
    %c0_3 = arith.constant 0 : index
    %1 = vector.load %arg1[%c0_2, %c0_3] : memref<1x32xf32, #tpu.memory_space<vmem>>, vector<1x32xf32>
    %2 = vector.shape_cast %1 : vector<1x32xf32> to vector<1x1x32xf32>
    %3 = vector.broadcast %2 : vector<1x1x32xf32> to vector<2x8x32xf32>
    %4 = arith.mulf %0, %3 : vector<2x8x32xf32>
    %cst = arith.constant dense<0.000000e+00> : vector<2x8xf32>
    %5 = vector.multi_reduction <add>, %4, %cst [2] : vector<2x8x32xf32> to vector<2x8xf32>
    %cst_4 = arith.constant dense<0xFF800000> : vector<2xf32>
    %6 = vector.multi_reduction <maximumf>, %5, %cst_4 [1] : vector<2x8xf32> to vector<2xf32>
    %7 = vector.shape_cast %6 : vector<2xf32> to vector<2x1xf32>
    %8 = vector.broadcast %7 : vector<2x1xf32> to vector<2x8xf32>
    %9 = arith.subf %5, %8 : vector<2x8xf32>
    %10 = math.exp %9 : vector<2x8xf32>
    %cst_5 = arith.constant dense<0.000000e+00> : vector<2xf32>
    %11 = vector.multi_reduction <add>, %10, %cst_5 [1] : vector<2x8xf32> to vector<2xf32>
    %12 = vector.shape_cast %11 : vector<2xf32> to vector<2x1xf32>
    %13 = tpu.reciprocal %12 : vector<2x1xf32> -> vector<2x1xf32>
    %14 = vector.broadcast %13 : vector<2x1xf32> to vector<2x8xf32>
    %15 = arith.mulf %10, %14 : vector<2x8xf32>
    %c0_6 = arith.constant 0 : index
    %c0_7 = arith.constant 0 : index
    %16 = vector.load %arg4[%c0_6, %c0_7] : memref<2x8xf32, #tpu.memory_space<vmem>>, vector<2x8xf32>
    tpu.vector_store %arg4[%c0_6, %c0_7], %15 {strides = array<i32>} : memref<2x8xf32, #tpu.memory_space<vmem>>, vector<2x8xf32>,
    %17 = vector.shape_cast %15 : vector<2x8xf32> to vector<2x8x1xf32>
    %18 = vector.broadcast %17 : vector<2x8x1xf32> to vector<2x8x32xf32>
    %19 = arith.mulf %18, %0 : vector<2x8x32xf32>
    %cst_8 = arith.constant dense<0.000000e+00> : vector<2x32xf32>
    %20 = vector.multi_reduction <add>, %19, %cst_8 [1] : vector<2x8x32xf32> to vector<2x32xf32>
    %c0_9 = arith.constant 0 : index
    %c0_10 = arith.constant 0 : index
    %21 = vector.load %arg3[%c0_9, %c0_10] : memref<2x32xf32, #tpu.memory_space<vmem>>, vector<2x32xf32>
    tpu.vector_store %arg3[%c0_9, %c0_10], %20 {strides = array<i32>} : memref<2x32xf32, #tpu.memory_space<vmem>>, vector<2x32xf32>,
    return
  }
  func.func @transform_0(%arg0: i32) -> (i32, i32) {
    %c0_i32 = arith.constant 0 : i32
    %c0_i32_0 = arith.constant 0 : i32
    %c0_i32_1 = arith.constant 0 : i32
    return %c0_i32, %c0_i32_0 : i32, i32
  }
  func.func @transform_1(%arg0: i32) -> (i32, i32, i32) {
    %c0_i32 = arith.constant 0 : i32
    %c0_i32_0 = arith.constant 0 : i32
    %c0_i32_1 = arith.constant 0 : i32
    return %arg0, %c0_i32, %c0_i32_0 : i32, i32, i32
  }
  func.func @transform_2(%arg0: i32) -> (i32, i32) {
    %c0_i32 = arith.constant 0 : i32
    %c0_i32_0 = arith.constant 0 : i32
    return %arg0, %c0_i32 : i32, i32
  }
  func.func @transform_3(%arg0: i32) -> (i32, i32) {
    %c0_i32 = arith.constant 0 : i32
    %c0_i32_0 = arith.constant 0 : i32
    return %arg0, %c0_i32 : i32, i32
  }
}

</mosaic_0001>

<llo_original>
// kernel: tpu_custom_call.1
$region0: #{tpu_custom_call.1}
  #allocation0 [shape = 'u32[]', space=smem, size = 0x4, offset = 0x4, fixed_abs, tag = 'smem constant byte address 0x4 - core index']
  #allocation1 [shape = 'u32[72,128]{1,0:T(1,128)}', space=vmem, size = 0x9000, scoped, tag = 'internal scratch']
  %s0 = inlined_call_operand.hbm [shape: f32[1,32], index: 0, kind: input, shape index: {}]
  %s1 = inlined_call_operand.hbm [shape: f32[2,8,32], index: 1, kind: input, shape index: {}]
  %s2 = inlined_call_operand.hbm [shape: f32[2,32], index: 2, kind: output, shape index: {0}]
  %s3 = inlined_call_operand.hbm [shape: f32[2,8], index: 3, kind: output, shape index: {1}]
  %4 = xla_tuple %s2, %s3
  %s5 = sld [smem:[#allocation0]]
  $region34: #{tpu_custom_call.1} parent=0
    _
  %s7 = ssub.s32 1, %s5
  %s8 = scalar_select 0, %s7, %s5
  $region1: #{tpu_custom_call.1} parent=0
    #allocation2 [shape = 'u8[512]{0}', space=vmem, size = 0x400, scoped, tag = 'input window, operand 0, single buffered']
    #allocation3 [shape = 's32[1]{0}', space=sflag, size = 0x4, scoped, tag = 'scoped memory for tpu_custom_call.1']
    #allocation4 [shape = 's32[1]{0}', space=sflag, size = 0x4, scoped, tag = 'scoped memory for tpu_custom_call.1']
    #allocation5 [shape = 'u8[8192]{0}', space=vmem, size = 0x2000, scoped, tag = 'input window, operand 1, single buffered']
    #allocation6 [shape = 's32[1]{0}', space=sflag, size = 0x4, scoped, tag = 'scoped memory for tpu_custom_call.1']
    #allocation7 [shape = 'u8[1024]{0}', space=vmem, size = 0x400, scoped, tag = 'output window, operand 0, single buffered']
    #allocation8 [shape = 'u8[1024]{0}', space=vmem, size = 0x400, scoped, tag = 'output window, operand 1, single buffered']
    #allocation9 [shape = 's32[1]{0}', space=sflag, size = 0x4, scoped, tag = 'scoped memory for tpu_custom_call.1']
    %9 = vsyncpa [#allocation3], 0
    %10 = vsyncpa [#allocation6], 0
    %11 = vsyncpa [#allocation4], 0
    %12 = vsyncpa [#allocation9], 0
    // Predicated region
    $region2: #{tpu_custom_call.1} parent=1 // pred_check
      _
    $region3: #{tpu_custom_call.1} parent=1 // pred_check_branch
      %14 = sbr.rel (0) target = $region5
    $region4: #{tpu_custom_call.1} parent=1 // pred_region
      %16 = vsyncadd [#allocation3], 0
      %s18 = sshll.u32 %s0, 4
      %s19 = int_to_ptr.hbm [resolvable:$true] %s18
      %s20 = sshll.u32 [#allocation2], 4
      %s21 = int_to_ptr.vmem [resolvable:$true] %s20
      %23 = dma.hbm_to_vmem [thread:$0]  %s19, 16, %s21, [#allocation3]
    $region5: #{tpu_custom_call.1} parent=1 // pred_fallthru
      _
    // Predicated region
    $region6: #{tpu_custom_call.1} parent=1 // pred_check
      _
    $region7: #{tpu_custom_call.1} parent=1 // pred_check_branch
      %25 = sbr.rel (0) target = $region9
    $region8: #{tpu_custom_call.1} parent=1 // pred_region
      %27 = vsyncadd [#allocation6], 0
      %s28 = sshll.u32 %s1, 4
      %s29 = int_to_ptr.hbm [resolvable:$true] %s28
      %s30 = sshll.u32 [#allocation5], 4
      %s31 = int_to_ptr.vmem [resolvable:$true] %s30
      %36 = dma.hbm_to_vmem [thread:$0]  %s29, 256, %s31, [#allocation6], 128, 128, 8
    $region9: #{tpu_custom_call.1} parent=1 // pred_fallthru
      _
    // Predicated region
    $region10: #{tpu_custom_call.1} parent=1 // pred_check
      _
    $region11: #{tpu_custom_call.1} parent=1 // pred_check_branch
      %38 = sbr.rel (0) target = $region13
    $region12: #{tpu_custom_call.1} parent=1 // pred_region
      %40 = dma.done [#allocation3], 16
    $region13: #{tpu_custom_call.1} parent=1 // pred_fallthru
      _
    // Predicated region
    $region14: #{tpu_custom_call.1} parent=1 // pred_check
      _
    $region15: #{tpu_custom_call.1} parent=1 // pred_check_branch
      %42 = sbr.rel (0) target = $region17
    $region16: #{tpu_custom_call.1} parent=1 // pred_region
      %44 = dma.done [#allocation6], 256
    $region17: #{tpu_custom_call.1} parent=1 // pred_fallthru
      _
    %v45 = vld [vmem:[#allocation5] sm:$0xff]
    %v46 = vld [vmem:[#allocation5 + $0x8] sm:$0xff]
    %v47 = vld [vmem:[#allocation2] sm:$0x1]
    %v49 = vperm.slane %v47, 0
    %v51 = vmul.f32 %v45, %v49
    %v52 = vmul.f32 %v46, %v49
    %vm53 = vcmask 261120
    %v54 = vsel %vm53, %v51, 0.0
    %55 = vadd.xlane.f32.xlu0 %v54
    %v56 = vpop.xlane.xlu0 %55
    %v57 = vsel %vm53, %v52, 0.0
    %58 = vadd.xlane.f32.xlu0 %v57
    %v59 = vpop.xlane.xlu0 %58
    %v62 = vlaneseq
    %v63 = vand.u32 %v62, 127
    %v64 = vperm.slane %v56, %v63
    %v65 = vperm.slane %v59, %v63
    %vm66 = vcmask 1041409
    %v67 = vsel %vm66, %v65, %v64
    %vm69 = vcmask 58368
    %v70 = vsel %vm69, %v67, -inf
    %71 = vmax.xlane.f32.xlu0 %v70
    %v72 = vpop.xlane.xlu0 %71
    %v74 = vperm.slane %v72, 0
    %v75 = vperm.slane %v72, 1
    %v78 = vsub.f32 %v56, %v74
    %v79 = vsub.f32 %v59, %v75
    %v80 = vmul.f32 %v78, 1.442695
    %v81 = vpow.pop %v80
    %v82 = vmul.f32 %v79, 1.442695
    %v83 = vpow.pop %v82
    %86 = vset.pattern.permute.xlu0 0
    %87 = vperm.xlu0 %86, %v81
    %v88 = vpop.permute.xlu0 %87
    %89 = vset.pattern.permute.xlu0 0
    %90 = vperm.xlu0 %89, %v83
    %v91 = vpop.permute.xlu0 %90
    %v92 = vperm.slane %v88, %v63
    %v93 = vperm.slane %v91, %v63
    %v94 = vsel %vm66, %v93, %v92
    %v96 = vsel %vm69, %v94, 0.0
    %97 = vadd.xlane.f32.xlu0 %v96
    %v98 = vpop.xlane.xlu0 %97
    %v99 = vrcp.pop %v98
    %v100 = vmul.f32 %v98, %v99
    %v101 = vsub.f32 1.0, %v100
    %v102 = vmul.f32 %v99, %v101
    %v103 = vadd.f32 %v99, %v102
    %vm104 = vweird.f32 %v98
    %vm105 = vweird.f32 %v99
    %vm106 = vmor %vm104, %vm105
    %v107 = vsel %vm106, %v99, %v103
    %v108 = vand.u32 2147483647, %v98
    %vm109 = vcmp.eq.f32.partialorder %v108, 8.507059e+37
    %v110 = vand.u32 %v98, 2147483648
    %v111 = vor.u32 1.1754944e-38, %v110
    %v112 = vsel %vm109, %v111, %v107
    %v114 = vperm.slane %v112, 0
    %v115 = vperm.slane %v112, 1
    %v118 = vmul.f32 %v81, %v114
    %v119 = vmul.f32 %v83, %v115
    %122 = vset.pattern.permute.xlu0 0
    %123 = vperm.xlu0 %122, %v118
    %v124 = vpop.permute.xlu0 %123
    %125 = vset.pattern.permute.xlu0 0
    %126 = vperm.xlu0 %125, %v119
    %v127 = vpop.permute.xlu0 %126
    %v128 = vperm.slane %v124, %v63
    %v129 = vperm.slane %v127, %v63
    %v130 = vsel %vm66, %v129, %v128
    %132 = vst.msk [vmem:[#allocation8] sm:$0x3] %vm69, %v130
    %v135 = vmul.f32 %v124, %v45
    %v136 = vmul.f32 %v127, %v46
    %v137 = vsel %vm53, %v135, 0.0
    %v138 = vrot.slane %v137, 4
    %v139 = vadd.f32 %v137, %v138
    %v140 = vrot.slane %v139, 2
    %v141 = vadd.f32 %v139, %v140
    %v142 = vrot.slane %v141, 1
    %v143 = vadd.f32 %v141, %v142
    %v144 = vsel %vm53, %v136, 0.0
    %v145 = vrot.slane %v144, 4
    %v146 = vadd.f32 %v144, %v145
    %v147 = vrot.slane %v146, 2
    %v148 = vadd.f32 %v146, %v147
    %v149 = vrot.slane %v148, 1
    %v150 = vadd.f32 %v148, %v149
    %v153 = vsel %vm66, %v150, %v143
    %vm155 = vcmask 254976
    %156 = vst.msk [vmem:[#allocation7] sm:$0x3] %vm155, %v153
    // Predicated region
    $region18: #{tpu_custom_call.1} parent=1 // pred_check
      _
    $region19: #{tpu_custom_call.1} parent=1 // pred_check_branch
      %158 = sbr.rel (0) target = $region21
    $region20: #{tpu_custom_call.1} parent=1 // pred_region
      %160 = vsyncadd [#allocation4], 0
      %s162 = sshll.u32 [#allocation7], 4
      %s163 = int_to_ptr.vmem [resolvable:$true] %s162
      %s164 = sshll.u32 %s2, 4
      %s165 = int_to_ptr.hbm [resolvable:$true] %s164
      %167 = dma.vmem_to_hbm [thread:$0]  %s163, 32, %s165, [#allocation4]
    $region21: #{tpu_custom_call.1} parent=1 // pred_fallthru
      _
    // Predicated region
    $region22: #{tpu_custom_call.1} parent=1 // pred_check
      _
    $region23: #{tpu_custom_call.1} parent=1 // pred_check_branch
      %169 = sbr.rel (0) target = $region25
    $region24: #{tpu_custom_call.1} parent=1 // pred_region
      %171 = vsyncadd [#allocation9], 0
      %s173 = sshll.u32 [#allocation8], 4
      %s174 = int_to_ptr.vmem [resolvable:$true] %s173
      %s175 = sshll.u32 %s3, 4
      %s176 = int_to_ptr.hbm [resolvable:$true] %s175
      %178 = dma.vmem_to_hbm [thread:$0]  %s174, 32, %s176, [#allocation9]
    $region25: #{tpu_custom_call.1} parent=1 // pred_fallthru
      _
    // Predicated region
    $region26: #{tpu_custom_call.1} parent=1 // pred_check
      _
    $region27: #{tpu_custom_call.1} parent=1 // pred_check_branch
      %180 = sbr.rel (0) target = $region29
    $region28: #{tpu_custom_call.1} parent=1 // pred_region
      %182 = dma.done [#allocation4], 32
    $region29: #{tpu_custom_call.1} parent=1 // pred_fallthru
      _
    // Predicated region
    $region30: #{tpu_custom_call.1} parent=1 // pred_check
      _
    $region31: #{tpu_custom_call.1} parent=1 // pred_check_branch
      %184 = sbr.rel (0) target = $region33
    $region32: #{tpu_custom_call.1} parent=1 // pred_region
      %186 = dma.done [#allocation9], 32
    $region33: #{tpu_custom_call.1} parent=1 // pred_fallthru
      _
    %187 = vsyncpa [#allocation3], 1
    %188 = vsyncpa [#allocation6], 1
    %189 = vsyncpa [#allocation4], 1
    %190 = vsyncpa [#allocation9], 1

</llo_original>
